<compile_context>
chip_gen: v6e
topology: v6e:2x2x1
jax: 0.10.0
libtpu: 0.0.40
codegen_flags: <defaults>
</compile_context>

<pallas_src>
import math

import jax
import jax.numpy as jnp
from jax.experimental import pallas as pl
from jax.experimental.pallas import tpu as pltpu

_LOG_CLAMP = math.log(1e-10)
# Per-input f32 block budget (keeps 2 inputs x 2 pipeline buffers + intermediates
# comfortably inside the scoped-VMEM defaults on v5e/v6e/v7x).
_VMEM_BLOCK_BUDGET = 2 * 1024 * 1024


def _make_kernel(tile_c, n_valid_cols, needs_mask):
    def kernel(out_ref, tgt_ref, colsum_ref):
        x = out_ref[...].astype(jnp.float32)          # (N, TILE_C)
        t = tgt_ref[...].astype(jnp.float32)          # (N, TILE_C)

        # Numerically stable log-softmax along axis 0 (per column).
        m = jnp.max(x, axis=0, keepdims=True)         # (1, TILE_C)
        xs = x - m
        e = jnp.exp(xs)                               # the only full-size transcendental pair member
        sum_e = jnp.sum(e, axis=0, keepdims=True)     # (1, TILE_C)
        lse = jnp.log(sum_e)                          # (1, TILE_C) -> cheap
        # log(max(p, 1e-10)) == max(log p, log 1e-10) because log is monotone.
        log_p = jnp.maximum(xs - lse, _LOG_CLAMP)     # (N, TILE_C), no second full log
        # p itself only needed for log(1 - p); normalize via (1, TILE_C) reciprocal.
        p = e * pl.reciprocal(sum_e, approx=False)
        log_1mp = jnp.log(jnp.maximum(1.0 - p, 1e-10))

        # t*log_p + (1-t)*log_1mp with one fewer multiply.
        term = t * (log_p - log_1mp) + log_1mp        # (N, TILE_C)

        if needs_mask:
            j = pl.program_id(0)
            col = jax.lax.broadcasted_iota(jnp.int32, term.shape, 1) + j * tile_c
            term = jnp.where(col < n_valid_cols, term, 0.0)

        # Per-column partial sums (lane-dense (1, TILE_C) block); final sum/N in wrapper.
        colsum_ref[...] = jnp.sum(term, axis=0, keepdims=True)

    return kernel


def self_cross_entropy(output, target, *, tile_c=None):
    """output, target: (N, C) arrays (f32 or bf16). Returns scalar float32 loss."""
    assert output.shape == target.shape and output.ndim == 2
    N, C = output.shape

    # Choose a lane-dense class-axis tile. NOTE: never tile N (the softmax axis).
    if tile_c is None:
        tile_c = max(128, (_VMEM_BLOCK_BUDGET // (N * 4)) // 128 * 128)
    assert tile_c % 128 == 0
    c_pad0 = ((C + 127) // 128) * 128
    tile_c = min(tile_c, c_pad0)
    c_pad = ((C + tile_c - 1) // tile_c) * tile_c
    needs_mask = c_pad != C

    if needs_mask:
        pad = ((0, 0), (0, c_pad - C))
        output = jnp.pad(output, pad)
        target = jnp.pad(target, pad)

    num_tiles = c_pad // tile_c

    cost = pl.CostEstimate(
        flops=12 * N * c_pad,
        transcendentals=2 * N * c_pad,
        bytes_accessed=(output.size * output.dtype.itemsize
                        + target.size * target.dtype.itemsize
                        + c_pad * 4),
    )

    colsums = pl.pallas_call(
        _make_kernel(tile_c, C, needs_mask),
        out_shape=jax.ShapeDtypeStruct((1, c_pad), jnp.float32),
        grid=(num_tiles,),
        in_specs=[
            pl.BlockSpec((N, tile_c), lambda j: (0, j)),
            pl.BlockSpec((N, tile_c), lambda j: (0, j)),
        ],
        out_specs=pl.BlockSpec((1, tile_c), lambda j: (0, j)),
        compiler_params=pltpu.CompilerParams(
            dimension_semantics=("parallel",),
        ),
        cost_estimate=cost,
    )(output, target)

    # mean over rows of the per-row sums == total sum / N
    return -jnp.sum(colsums) / N


def _reference(output, target):
    # pure-JAX reference mirroring the PyTorch forward
    p = jax.nn.softmax(output.astype(jnp.float32), axis=0)
    t = target.astype(jnp.float32)
    term = t * jnp.log(jnp.maximum(p, 1e-10)) + (1 - t) * jnp.log(
        jnp.maximum(1 - p, 1e-10)
    )
    return -jnp.mean(jnp.sum(term, axis=1))


if __name__ == "__main__":
    key = jax.random.PRNGKey(0)
    k1, k2, k3, k4 = jax.random.split(key, 4)

    # Case 1: small demo shapes, (batch, classes) convention of the PyTorch module.
    N, C = 8, 32
    output = jax.random.normal(k1, (N, C), dtype=jnp.float32)   # raw logits
    target = jax.random.uniform(k2, (N, C), dtype=jnp.float32)  # soft labels in [0, 1]
    loss = self_cross_entropy(output, target)
    jax.block_until_ready(loss)
    ref = _reference(output, target)
    assert jnp.allclose(loss, ref, rtol=1e-5, atol=1e-5), (loss, ref)

    # Case 2: ragged C -> exercises the multi-tile grid + padding/masking path.
    N2, C2 = 16, 300
    out2 = jax.random.normal(k3, (N2, C2), dtype=jnp.float32)
    tgt2 = jax.random.uniform(k4, (N2, C2), dtype=jnp.float32)
    loss2 = self_cross_entropy(out2, tgt2, tile_c=128)
    jax.block_until_ready(loss2)
    ref2 = _reference(out2, tgt2)
    assert jnp.allclose(loss2, ref2, rtol=1e-5, atol=1e-5), (loss2, ref2)

    print("KERNEL_OK")
</pallas_src>

<mosaic_0001>
module attributes {stable_mosaic.version = 11 : i64} {
  func.func @kernel(%arg0: i32, %arg1: memref<8x128xf32, #tpu.memory_space<vmem>>, %arg2: memref<8x128xf32, #tpu.memory_space<vmem>>, %arg3: memref<1x128xf32, #tpu.memory_space<vmem>>) attributes {dimension_semantics = [#tpu.dimension_semantics<parallel>], iteration_bounds = array<i64: 1>, scalar_prefetch = 0 : i64, scratch_operands = 0 : i64, tpu.core_type = #tpu.core_type<tc>, window_params = [{transform_indices = @transform_0, window_bounds = array<i64: 8, 128>}, {transform_indices = @transform_1, window_bounds = array<i64: 8, 128>}, {transform_indices = @transform_2, window_bounds = array<i64: 1, 128>}]} {
    %c0 = arith.constant 0 : index
    %c0_0 = arith.constant 0 : index
    %0 = vector.load %arg1[%c0, %c0_0] : memref<8x128xf32, #tpu.memory_space<vmem>>, vector<8x128xf32>
    %c0_1 = arith.constant 0 : index
    %c0_2 = arith.constant 0 : index
    %1 = vector.load %arg2[%c0_1, %c0_2] : memref<8x128xf32, #tpu.memory_space<vmem>>, vector<8x128xf32>
    %cst = arith.constant dense<0xFF800000> : vector<128xf32>
    %2 = vector.multi_reduction <maximumf>, %0, %cst [0] : vector<8x128xf32> to vector<128xf32>
    %3 = vector.shape_cast %2 : vector<128xf32> to vector<1x128xf32>
    %4 = vector.broadcast %3 : vector<1x128xf32> to vector<8x128xf32>
    %5 = arith.subf %0, %4 : vector<8x128xf32>
    %6 = math.exp %5 : vector<8x128xf32>
    %cst_3 = arith.constant dense<0.000000e+00> : vector<128xf32>
    %7 = vector.multi_reduction <add>, %6, %cst_3 [0] : vector<8x128xf32> to vector<128xf32>
    %8 = vector.shape_cast %7 : vector<128xf32> to vector<1x128xf32>
    %9 = math.log %8 : vector<1x128xf32>
    %10 = vector.broadcast %9 : vector<1x128xf32> to vector<8x128xf32>
    %11 = arith.subf %5, %10 : vector<8x128xf32>
    %cst_4 = arith.constant -23.0258503 : f32
    %12 = vector.broadcast %cst_4 : f32 to vector<8x128xf32>
    %13 = arith.maximumf %11, %12 : vector<8x128xf32>
    %14 = tpu.reciprocal %8 : vector<1x128xf32> -> vector<1x128xf32>
    %15 = vector.broadcast %14 : vector<1x128xf32> to vector<8x128xf32>
    %16 = arith.mulf %6, %15 : vector<8x128xf32>
    %cst_5 = arith.constant 1.000000e+00 : f32
    %17 = vector.broadcast %cst_5 : f32 to vector<8x128xf32>
    %18 = arith.subf %17, %16 : vector<8x128xf32>
    %cst_6 = arith.constant 1.000000e-10 : f32
    %19 = vector.broadcast %cst_6 : f32 to vector<8x128xf32>
    %20 = arith.maximumf %18, %19 : vector<8x128xf32>
    %21 = math.log %20 : vector<8x128xf32>
    %22 = arith.subf %13, %21 : vector<8x128xf32>
    %23 = arith.mulf %1, %22 : vector<8x128xf32>
    %24 = arith.addf %23, %21 : vector<8x128xf32>
    %25 = tpu.iota {dimensions = array<i32: 1>} : vector<8x128xi32>
    %c128_i32 = arith.constant 128 : i32
    %26 = arith.muli %arg0, %c128_i32 : i32
    %27 = vector.broadcast %26 : i32 to vector<8x128xi32>
    %28 = arith.addi %25, %27 : vector<8x128xi32>
    %c32_i32 = arith.constant 32 : i32
    %29 = vector.broadcast %c32_i32 : i32 to vector<8x128xi32>
    %30 = arith.cmpi slt, %28, %29 : vector<8x128xi32>
    %cst_7 = arith.constant 0.000000e+00 : f32
    %31 = vector.broadcast %cst_7 : f32 to vector<8x128xf32>
    %32 = arith.select %30, %24, %31 : vector<8x128xi1>, vector<8x128xf32>
    %cst_8 = arith.constant dense<0.000000e+00> : vector<128xf32>
    %33 = vector.multi_reduction <add>, %32, %cst_8 [0] : vector<8x128xf32> to vector<128xf32>
    %34 = vector.shape_cast %33 : vector<128xf32> to vector<1x128xf32>
    %c0_9 = arith.constant 0 : index
    %c0_10 = arith.constant 0 : index
    %35 = vector.load %arg3[%c0_9, %c0_10] : memref<1x128xf32, #tpu.memory_space<vmem>>, vector<1x128xf32>
    tpu.vector_store %arg3[%c0_9, %c0_10], %34 {strides = array<i32>} : memref<1x128xf32, #tpu.memory_space<vmem>>, vector<1x128xf32>,
    return
  }
  func.func @transform_0(%arg0: i32) -> (i32, i32) {
    %c0_i32 = arith.constant 0 : i32
    %c0_i32_0 = arith.constant 0 : i32
    return %c0_i32, %arg0 : i32, i32
  }
  func.func @transform_1(%arg0: i32) -> (i32, i32) {
    %c0_i32 = arith.constant 0 : i32
    %c0_i32_0 = arith.constant 0 : i32
    return %c0_i32, %arg0 : i32, i32
  }
  func.func @transform_2(%arg0: i32) -> (i32, i32) {
    %c0_i32 = arith.constant 0 : i32
    %c0_i32_0 = arith.constant 0 : i32
    return %c0_i32, %arg0 : i32, i32
  }
}

</mosaic_0001>

<llo_original>
// kernel: tpu_custom_call.1
$region0: #{tpu_custom_call.1}
  #allocation0 [shape = 'u32[]', space=smem, size = 0x4, offset = 0x4, fixed_abs, tag = 'smem constant byte address 0x4 - core index']
  #allocation1 [shape = 'u32[144,128]{1,0:T(1,128)}', space=vmem, size = 0x12000, scoped, tag = 'internal scratch']
  %s0 = inlined_call_operand.hbm [shape: f32[8,128], index: 0, kind: input, shape index: {}]
  %s1 = inlined_call_operand.hbm [shape: f32[8,128], index: 1, kind: input, shape index: {}]
  %s2 = inlined_call_operand.hbm [shape: f32[1,128], index: 2, kind: output, shape index: {}]
  %s3 = sld [smem:[#allocation0]]
  $region26: #{tpu_custom_call.1} parent=0
    _
  %s5 = ssub.s32 1, %s3
  %s6 = scalar_select 0, %s5, %s3
  $region1: #{tpu_custom_call.1} parent=0
    #allocation2 [shape = 'u8[4096]{0}', space=vmem, size = 0x1000, scoped, tag = 'input window, operand 0, single buffered']
    #allocation3 [shape = 's32[1]{0}', space=sflag, size = 0x4, scoped, tag = 'scoped memory for tpu_custom_call.1']
    #allocation4 [shape = 's32[1]{0}', space=sflag, size = 0x4, scoped, tag = 'scoped memory for tpu_custom_call.1']
    #allocation5 [shape = 'u8[4096]{0}', space=vmem, size = 0x1000, scoped, tag = 'input window, operand 1, single buffered']
    #allocation6 [shape = 's32[1]{0}', space=sflag, size = 0x4, scoped, tag = 'scoped memory for tpu_custom_call.1']
    #allocation7 [shape = 'u8[512]{0}', space=vmem, size = 0x400, scoped, tag = 'output window, operand 0, single buffered']
    %7 = vsyncpa [#allocation3], 0
    %8 = vsyncpa [#allocation6], 0
    %9 = vsyncpa [#allocation4], 0
    // Predicated region
    $region2: #{tpu_custom_call.1} parent=1 // pred_check
      _
    $region3: #{tpu_custom_call.1} parent=1 // pred_check_branch
      %11 = sbr.rel (0) target = $region5
    $region4: #{tpu_custom_call.1} parent=1 // pred_region
      %s13 = ssub.s32 128, 128
      %14 = vsyncadd [#allocation3], %s13
      %s16 = sshll.u32 [#allocation2], 4
      %s17 = int_to_ptr.vmem [resolvable:$true] %s16
      %19 = dma.hbm_to_vmem [thread:$0]  %s0, 128, %s17, [#allocation3]
    $region5: #{tpu_custom_call.1} parent=1 // pred_fallthru
      _
    // Predicated region
    $region6: #{tpu_custom_call.1} parent=1 // pred_check
      _
    $region7: #{tpu_custom_call.1} parent=1 // pred_check_branch
      %21 = sbr.rel (0) target = $region9
    $region8: #{tpu_custom_call.1} parent=1 // pred_region
      %s23 = ssub.s32 128, 128
      %24 = vsyncadd [#allocation6], %s23
      %s26 = sshll.u32 [#allocation5], 4
      %s27 = int_to_ptr.vmem [resolvable:$true] %s26
      %29 = dma.hbm_to_vmem [thread:$0]  %s1, 128, %s27, [#allocation6]
    $region9: #{tpu_custom_call.1} parent=1 // pred_fallthru
      _
    // Predicated region
    $region10: #{tpu_custom_call.1} parent=1 // pred_check
      _
    $region11: #{tpu_custom_call.1} parent=1 // pred_check_branch
      %31 = sbr.rel (0) target = $region13
    $region12: #{tpu_custom_call.1} parent=1 // pred_region
      %32 = dma.done [#allocation3], 128
    $region13: #{tpu_custom_call.1} parent=1 // pred_fallthru
      _
    // Predicated region
    $region14: #{tpu_custom_call.1} parent=1 // pred_check
      _
    $region15: #{tpu_custom_call.1} parent=1 // pred_check_branch
      %34 = sbr.rel (0) target = $region17
    $region16: #{tpu_custom_call.1} parent=1 // pred_region
      %35 = dma.done [#allocation6], 128
    $region17: #{tpu_custom_call.1} parent=1 // pred_fallthru
      _
    %v36 = vld [vmem:[#allocation2] sm:$0xff]
    %v37 = vld [vmem:[#allocation5] sm:$0xff]
    %v38 = vrot.slane %v36, 4
    %v39 = vmax.f32 %v36, %v38
    %v40 = vrot.slane %v39, 2
    %v41 = vmax.f32 %v39, %v40
    %v42 = vrot.slane %v41, 1
    %v43 = vmax.f32 %v41, %v42
    %v44 = vsub.f32 %v36, %v43
    %v45 = vmul.f32 %v44, 1.442695
    %v46 = vpow.pop %v45
    %v47 = vrot.slane %v46, 4
    %v48 = vadd.f32 %v46, %v47
    %v49 = vrot.slane %v48, 2
    %v50 = vadd.f32 %v48, %v49
    %v51 = vrot.slane %v50, 1
    %v52 = vadd.f32 %v50, %v51
    %v53 = vlog2.pop %v52
    %v54 = vmul.f32 %v53, 0.6931472
    %v55 = vsub.f32 %v44, %v54
    %v56 = vmax.f32 %v55, -23.02585
    %v57 = vrcp.pop %v52
    %v58 = vmul.f32 %v46, %v57
    %v59 = vsub.f32 1.0, %v58
    %v60 = vmax.f32 %v59, 1e-10
    %v61 = vlog2.pop %v60
    %v62 = vmul.f32 %v61, 0.6931472
    %v63 = vsub.f32 %v56, %v62
    %v64 = vmul.f32 %v37, %v63
    %v65 = vadd.f32 %v64, %v62
    %v66 = vlaneseq
    %v67 = vand.u32 %v66, 127
    %s68 = smul.u32 0, 128
    %v69 = vstv %s68
    %v70 = vadd.s32 %v67, %v69
    %vm71 = vcmp.lt.s32.totalorder %v70, 32
    %v72 = vsel %vm71, %v65, 0.0
    %v73 = vrot.slane %v72, 4
    %v74 = vadd.f32 %v72, %v73
    %v75 = vrot.slane %v74, 2
    %v76 = vadd.f32 %v74, %v75
    %v77 = vrot.slane %v76, 1
    %v78 = vadd.f32 %v76, %v77
    %79 = vst [vmem:[#allocation7] sm:$0x1] %v78
    // Predicated region
    $region18: #{tpu_custom_call.1} parent=1 // pred_check
      _
    $region19: #{tpu_custom_call.1} parent=1 // pred_check_branch
      %81 = sbr.rel (0) target = $region21
    $region20: #{tpu_custom_call.1} parent=1 // pred_region
      %s83 = ssub.s32 16, 16
      %84 = vsyncadd [#allocation4], %s83
      %s86 = sshll.u32 [#allocation7], 4
      %s87 = int_to_ptr.vmem [resolvable:$true] %s86
      %89 = dma.vmem_to_hbm [thread:$0]  %s87, 16, %s2, [#allocation4]
    $region21: #{tpu_custom_call.1} parent=1 // pred_fallthru
      _
    // Predicated region
    $region22: #{tpu_custom_call.1} parent=1 // pred_check
      _
    $region23: #{tpu_custom_call.1} parent=1 // pred_check_branch
      %91 = sbr.rel (0) target = $region25
    $region24: #{tpu_custom_call.1} parent=1 // pred_region
      %92 = dma.done [#allocation4], 16
    $region25: #{tpu_custom_call.1} parent=1 // pred_fallthru
      _
    %93 = vsyncpa [#allocation3], 1
    %94 = vsyncpa [#allocation6], 1
    %95 = vsyncpa [#allocation4], 1

</llo_original>
